<compile_context>
chip_gen: v6e
topology: v6e:2x2x1
jax: 0.10.0
libtpu: 0.0.40
codegen_flags: <defaults>
</compile_context>

<pallas_src>
import functools

import jax
import jax.numpy as jnp
import numpy as np
from jax.experimental import pallas as pl
from jax.experimental.pallas import tpu as pltpu


def _pair_loss_kernel(x_ref, y_ref, o_ref, acc_ref, *, n_valid):
    """Processes one (tile_rows, cols) tile of the flattened logit/target slabs."""
    pid = pl.program_id(0)
    tile_rows, cols = acc_ref.shape

    @pl.when(pid == 0)
    def _init():
        acc_ref[...] = jnp.zeros_like(acc_ref)

    x = x_ref[...]                       # (tile_rows, cols) f32 logits
    match = y_ref[...] != 0              # (tile_rows, cols) bool targets

    # Flat element index -> mask wrapper padding so the mean divides by the
    # true B*topk (and any out-of-range data contributes exactly zero).
    row = jax.lax.broadcasted_iota(jnp.int32, (tile_rows, cols), 0)
    col = jax.lax.broadcasted_iota(jnp.int32, (tile_rows, cols), 1)
    flat = (pid * tile_rows + row) * cols + col
    valid = flat < n_valid

    x = jnp.where(valid, x, 0.0)         # sanitize padded elements
    # Numerically-stable BCE-with-logits (matches torch.nn.BCEWithLogitsLoss):
    #   l = max(x, 0) - x*y + log1p(exp(-|x|)),   y in {0, 1}
    per_elem = (jnp.maximum(x, 0.0)
                - jnp.where(match, x, 0.0)
                + jnp.log1p(jnp.exp(-jnp.abs(x))))
    acc_ref[...] += jnp.where(valid, per_elem, 0.0)

    @pl.when(pid == pl.num_programs(0) - 1)
    def _finalize():
        o_ref[0, 0] = jnp.sum(acc_ref[...]) / n_valid


def pair_loss(features, labels, *, tile_rows=1024, slab_cols=512):
    """features: (B, topk, 1) float logits; labels: (B, topk) int.

    Returns the scalar float32 mean BCE-with-logits loss, where the binary
    target for (b, k) is 1.0 iff labels[b, k] == labels[b, 0].
    """
    B, K, D = features.shape
    assert D == 1, "PairLoss expects a single logit per (batch, topk) entry"
    n = B * K

    # Flatten to lane-dense slabs; exact pair-match targets as a 1-byte stream.
    x_flat = features.reshape(n).astype(jnp.float32)
    y_flat = (labels == labels[:, :1]).reshape(n).astype(jnp.int8)

    n_rows = pl.cdiv(n, slab_cols)
    tr = min(tile_rows, n_rows)              # one full block if small
    n_rows_padded = pl.cdiv(n_rows, tr) * tr  # avoid partial edge blocks
    pad = n_rows_padded * slab_cols - n
    if pad:
        x_flat = jnp.pad(x_flat, (0, pad))
        y_flat = jnp.pad(y_flat, (0, pad))
    x2 = x_flat.reshape(n_rows_padded, slab_cols)
    y2 = y_flat.reshape(n_rows_padded, slab_cols)

    grid = (n_rows_padded // tr,)

    out = pl.pallas_call(
        functools.partial(_pair_loss_kernel, n_valid=n),
        out_shape=jax.ShapeDtypeStruct((1, 1), jnp.float32),
        grid_spec=pltpu.PrefetchScalarGridSpec(
            num_scalar_prefetch=0,
            grid=grid,
            in_specs=[
                pl.BlockSpec((tr, slab_cols), lambda i: (i, 0)),
                pl.BlockSpec((tr, slab_cols), lambda i: (i, 0)),
            ],
            out_specs=pl.BlockSpec(memory_space=pltpu.SMEM),
            scratch_shapes=[pltpu.VMEM((tr, slab_cols), jnp.float32)],
        ),
        compiler_params=pltpu.CompilerParams(
            dimension_semantics=("arbitrary",)),
    )(x2, y2)
    return out[0, 0]


def _pair_loss_ref(features, labels):
    """Pure NumPy float64 reference mirroring the PyTorch forward exactly."""
    x = np.asarray(features, dtype=np.float64).reshape(-1)
    lab = np.asarray(labels)
    y = (lab == lab[:, :1]).astype(np.float64).reshape(-1)
    per = np.maximum(x, 0.0) - x * y + np.log1p(np.exp(-np.abs(x)))
    return float(per.mean())


if __name__ == "__main__":
    # Small shape implied by the module: batch=2, topk=8, dim=1.
    kf, kl = jax.random.split(jax.random.PRNGKey(0))
    B, TOPK, DIM = 2, 8, 1
    features = jax.random.normal(kf, (B, TOPK, DIM), dtype=jnp.float32)
    labels = jax.random.randint(kl, (B, TOPK), minval=0, maxval=3,
                                dtype=jnp.int32)

    loss = jax.block_until_ready(pair_loss(features, labels))
    ref = _pair_loss_ref(features, labels)
    assert jnp.allclose(loss, ref, rtol=1e-5, atol=1e-5), (loss, ref)

    # Larger shape: exercises the multi-tile grid, the accumulator across grid
    # steps, and the padded-element masking (B*topk not a multiple of the
    # slab/tile size).
    kf2, kl2 = jax.random.split(jax.random.PRNGKey(1))
    B2, TOPK2 = 66000, 8
    features2 = jax.random.normal(kf2, (B2, TOPK2, 1), dtype=jnp.float32)
    labels2 = jax.random.randint(kl2, (B2, TOPK2), minval=0, maxval=3,
                                 dtype=jnp.int32)

    loss2 = jax.block_until_ready(pair_loss(features2, labels2))
    ref2 = _pair_loss_ref(features2, labels2)
    assert jnp.allclose(loss2, ref2, rtol=1e-4, atol=1e-4), (loss2, ref2)

    print("KERNEL_OK")
</pallas_src>

<mosaic_0001>
module attributes {stable_mosaic.version = 11 : i64} {
  func.func @_pair_loss_kernel(%arg0: i32, %arg1: memref<1x512xf32, #tpu.memory_space<vmem>>, %arg2: memref<1x512xi8, #tpu.memory_space<vmem>>, %arg3: memref<1x1xf32, #tpu.memory_space<smem>>, %arg4: memref<1x512xf32, #tpu.memory_space<vmem>>) attributes {dimension_semantics = [#tpu.dimension_semantics<arbitrary>], iteration_bounds = array<i64: 1>, scalar_prefetch = 0 : i64, scratch_operands = 1 : i64, tpu.core_type = #tpu.core_type<tc>, window_params = [{transform_indices = @transform_0, window_bounds = array<i64: 1, 512>}, {transform_indices = @transform_1, window_bounds = array<i64: 1, 512>}, {transform_indices = @transform_2, window_bounds = array<i64: 1, 1>}]} {
    %c0_i32 = arith.constant 0 : i32
    %0 = arith.cmpi eq, %arg0, %c0_i32 : i32
    %1 = arith.extui %0 : i1 to i32
    %c0_i32_0 = arith.constant 0 : i32
    %2 = arith.cmpi ne, %1, %c0_i32_0 : i32
    scf.if %2 {
      %cst_14 = arith.constant 0.000000e+00 : f32
      %38 = vector.broadcast %cst_14 : f32 to vector<1x512xf32>
      %c0_15 = arith.constant 0 : index
      %c0_16 = arith.constant 0 : index
      %39 = vector.load %arg4[%c0_15, %c0_16] : memref<1x512xf32, #tpu.memory_space<vmem>>, vector<1x512xf32>
      tpu.vector_store %arg4[%c0_15, %c0_16], %38 {strides = array<i32>} : memref<1x512xf32, #tpu.memory_space<vmem>>, vector<1x512xf32>,
    } else {
    }
    %c0 = arith.constant 0 : index
    %c0_1 = arith.constant 0 : index
    %3 = vector.load %arg1[%c0, %c0_1] : memref<1x512xf32, #tpu.memory_space<vmem>>, vector<1x512xf32>
    %c0_2 = arith.constant 0 : index
    %c0_3 = arith.constant 0 : index
    %4 = vector.load %arg2[%c0_2, %c0_3] : memref<1x512xi8, #tpu.memory_space<vmem>>, vector<1x512xi8>
    %c0_i8 = arith.constant 0 : i8
    %5 = vector.broadcast %c0_i8 : i8 to vector<1x512xi8>
    %6 = arith.cmpi ne, %4, %5 : vector<1x512xi8>
    %7 = tpu.iota {dimensions = array<i32: 0>} : vector<1x512xi32>
    %8 = tpu.iota {dimensions = array<i32: 1>} : vector<1x512xi32>
    %c1_i32 = arith.constant 1 : i32
    %9 = arith.muli %arg0, %c1_i32 : i32
    %10 = vector.broadcast %9 : i32 to vector<1x512xi32>
    %11 = arith.addi %10, %7 : vector<1x512xi32>
    %c512_i32 = arith.constant 512 : i32
    %12 = vector.broadcast %c512_i32 : i32 to vector<1x512xi32>
    %13 = arith.muli %11, %12 : vector<1x512xi32>
    %14 = arith.addi %13, %8 : vector<1x512xi32>
    %c16_i32 = arith.constant 16 : i32
    %15 = vector.broadcast %c16_i32 : i32 to vector<1x512xi32>
    %16 = arith.cmpi slt, %14, %15 : vector<1x512xi32>
    %cst = arith.constant 0.000000e+00 : f32
    %17 = vector.broadcast %cst : f32 to vector<1x512xf32>
    %18 = arith.select %16, %3, %17 : vector<1x512xi1>, vector<1x512xf32>
    %cst_4 = arith.constant 0.000000e+00 : f32
    %19 = vector.broadcast %cst_4 : f32 to vector<1x512xf32>
    %20 = arith.maximumf %18, %19 : vector<1x512xf32>
    %cst_5 = arith.constant 0.000000e+00 : f32
    %21 = vector.broadcast %cst_5 : f32 to vector<1x512xf32>
    %22 = arith.select %6, %18, %21 : vector<1x512xi1>, vector<1x512xf32>
    %23 = arith.subf %20, %22 : vector<1x512xf32>
    %24 = math.absf %18 : vector<1x512xf32>
    %cst_6 = arith.constant 0.000000e+00 : f32
    %25 = vector.broadcast %cst_6 : f32 to vector<1x512xf32>
    %26 = arith.subf %25, %24 : vector<1x512xf32>
    %27 = math.exp %26 : vector<1x512xf32>
    %28 = math.log1p %27 : vector<1x512xf32>
    %29 = arith.addf %23, %28 : vector<1x512xf32>
    %c0_7 = arith.constant 0 : index
    %c0_8 = arith.constant 0 : index
    %30 = vector.load %arg4[%c0_7, %c0_8] : memref<1x512xf32, #tpu.memory_space<vmem>>, vector<1x512xf32>
    %cst_9 = arith.constant 0.000000e+00 : f32
    %31 = vector.broadcast %cst_9 : f32 to vector<1x512xf32>
    %32 = arith.select %16, %29, %31 : vector<1x512xi1>, vector<1x512xf32>
    %33 = arith.addf %30, %32 : vector<1x512xf32>
    %c0_10 = arith.constant 0 : index
    %c0_11 = arith.constant 0 : index
    %34 = vector.load %arg4[%c0_10, %c0_11] : memref<1x512xf32, #tpu.memory_space<vmem>>, vector<1x512xf32>
    tpu.vector_store %arg4[%c0_10, %c0_11], %33 {strides = array<i32>} : memref<1x512xf32, #tpu.memory_space<vmem>>, vector<1x512xf32>,
    %c0_i32_12 = arith.constant 0 : i32
    %35 = arith.cmpi eq, %arg0, %c0_i32_12 : i32
    %36 = arith.extui %35 : i1 to i32
    %c0_i32_13 = arith.constant 0 : i32
    %37 = arith.cmpi ne, %36, %c0_i32_13 : i32
    scf.if %37 {
      %c0_14 = arith.constant 0 : index
      %c0_15 = arith.constant 0 : index
      %38 = vector.load %arg4[%c0_14, %c0_15] : memref<1x512xf32, #tpu.memory_space<vmem>>, vector<1x512xf32>
      %39 = vector.shape_cast %38 : vector<1x512xf32> to vector<1x1x512xf32>
      %cst_16 = arith.constant dense<0.000000e+00> : vector<1xf32>
      %40 = vector.multi_reduction <add>, %39, %cst_16 [1, 2] : vector<1x1x512xf32> to vector<1xf32>
      %41 = vector.shape_cast %40 : vector<1xf32> to vector<1x1x1xf32>
      %42 = vector.extract %41[0, 0, 0] : f32 from vector<1x1x1xf32>
      %cst_17 = arith.constant 1.600000e+01 : f32
      %43 = arith.divf %42, %cst_17 : f32
      %c0_18 = arith.constant 0 : index
      %c0_19 = arith.constant 0 : index
      %44 = memref.load %arg3[%c0_18, %c0_19] : memref<1x1xf32, #tpu.memory_space<smem>>
      memref.store %43, %arg3[%c0_18, %c0_19] : memref<1x1xf32, #tpu.memory_space<smem>>
    } else {
    }
    return
  }
  func.func @transform_0(%arg0: i32) -> (i32, i32) {
    %c0_i32 = arith.constant 0 : i32
    %c0_i32_0 = arith.constant 0 : i32
    return %arg0, %c0_i32 : i32, i32
  }
  func.func @transform_1(%arg0: i32) -> (i32, i32) {
    %c0_i32 = arith.constant 0 : i32
    %c0_i32_0 = arith.constant 0 : i32
    return %arg0, %c0_i32 : i32, i32
  }
  func.func @transform_2(%arg0: i32) -> (i32, i32) {
    %c0_i32 = arith.constant 0 : i32
    %c0_i32_0 = arith.constant 0 : i32
    %c0_i32_1 = arith.constant 0 : i32
    return %c0_i32, %c0_i32_0 : i32, i32
  }
}

</mosaic_0001>

<llo_original>
// kernel: tpu_custom_call.1
$region0: #{tpu_custom_call.1}
  #allocation0 [shape = 'u32[]', space=smem, size = 0x4, offset = 0x4, fixed_abs, tag = 'smem constant byte address 0x4 - core index']
  #allocation1 [shape = 'u32[144,128]{1,0:T(1,128)}', space=vmem, size = 0x12000, scoped, tag = 'internal scratch']
  #allocation2 [shape = 'f32[1,512]{1,0:T(1,128)}', space=vmem, size = 0x800, scoped, tag = 'scratch operand']
  %s0 = inlined_call_operand.hbm [shape: f32[1,512], index: 0, kind: input, shape index: {}]
  %s1 = inlined_call_operand.hbm [shape: s8[1,512], index: 1, kind: input, shape index: {}]
  %s2 = inlined_call_operand.hbm [shape: f32[1,1], index: 2, kind: output, shape index: {}]
  %s3 = sld [smem:[#allocation0]]
  $region34: #{tpu_custom_call.1} parent=0
    _
  %s5 = ssub.s32 1, %s3
  %s6 = scalar_select 0, %s5, %s3
  $region1: #{tpu_custom_call.1} parent=0
    #allocation3 [shape = 'u8[2048]{0}', space=vmem, size = 0x800, scoped, tag = 'input window, operand 0, single buffered']
    #allocation4 [shape = 's32[1]{0}', space=sflag, size = 0x4, scoped, tag = 'scoped memory for tpu_custom_call.1']
    #allocation5 [shape = 's32[1]{0}', space=sflag, size = 0x4, scoped, tag = 'scoped memory for tpu_custom_call.1']
    #allocation6 [shape = 'u8[2048]{0}', space=vmem, size = 0x800, scoped, tag = 'input window, operand 1, single buffered']
    #allocation7 [shape = 's32[1]{0}', space=sflag, size = 0x4, scoped, tag = 'scoped memory for tpu_custom_call.1']
    #allocation8 [shape = 'u8[512]{0}', space=smem, size = 0x200, scoped, tag = 'output window, operand 0, single buffered']
    %7 = vsyncpa [#allocation4], 0
    %8 = vsyncpa [#allocation7], 0
    %9 = vsyncpa [#allocation5], 0
    // Predicated region
    $region2: #{tpu_custom_call.1} parent=1 // pred_check
      _
    $region3: #{tpu_custom_call.1} parent=1 // pred_check_branch
      %11 = sbr.rel (0) target = $region5
    $region4: #{tpu_custom_call.1} parent=1 // pred_region
      %s13 = ssub.s32 64, 64
      %14 = vsyncadd [#allocation4], %s13
      %s16 = sshll.u32 [#allocation3], 4
      %s17 = int_to_ptr.vmem [resolvable:$true] %s16
      %19 = dma.hbm_to_vmem [thread:$0]  %s0, 64, %s17, [#allocation4]
    $region5: #{tpu_custom_call.1} parent=1 // pred_fallthru
      _
    // Predicated region
    $region6: #{tpu_custom_call.1} parent=1 // pred_check
      _
    $region7: #{tpu_custom_call.1} parent=1 // pred_check_branch
      %21 = sbr.rel (0) target = $region9
    $region8: #{tpu_custom_call.1} parent=1 // pred_region
      %s23 = ssub.s32 64, 64
      %24 = vsyncadd [#allocation7], %s23
      %s26 = sshll.u32 [#allocation6], 4
      %s27 = int_to_ptr.vmem [resolvable:$true] %s26
      %29 = dma.hbm_to_vmem [thread:$0]  %s1, 64, %s27, [#allocation7]
    $region9: #{tpu_custom_call.1} parent=1 // pred_fallthru
      _
    // Predicated region
    $region10: #{tpu_custom_call.1} parent=1 // pred_check
      _
    $region11: #{tpu_custom_call.1} parent=1 // pred_check_branch
      %31 = sbr.rel (0) target = $region13
    $region12: #{tpu_custom_call.1} parent=1 // pred_region
      %32 = dma.done [#allocation4], 64
    $region13: #{tpu_custom_call.1} parent=1 // pred_fallthru
      _
    // Predicated region
    $region14: #{tpu_custom_call.1} parent=1 // pred_check
      _
    $region15: #{tpu_custom_call.1} parent=1 // pred_check_branch
      %34 = sbr.rel (0) target = $region17
    $region16: #{tpu_custom_call.1} parent=1 // pred_region
      %35 = dma.done [#allocation7], 64
    $region17: #{tpu_custom_call.1} parent=1 // pred_fallthru
      _
    %p38 = scmp.eq.s32.totalorder 0, 0
    // Predicated region
    $region18: #{tpu_custom_call.1} parent=1 // pred_check
      %p39 = pneg %p38
    $region19: #{tpu_custom_call.1} parent=1 // pred_check_branch
      %41 = sbr.rel (%p39) target = $region21
    $region20: #{tpu_custom_call.1} parent=1 // pred_region
      %v42 = vlaneseq
      %vm43 = vcmp.ge.s32.totalorder %v42, 0
      %vm44 = vcmp.lt.s32.totalorder %v42, 512
      %vm45 = vmand %vm43, %vm44
      %46 = vst.msk [vmem:[#allocation2] sm:$0xf] %vm45, 0.0
    $region21: #{tpu_custom_call.1} parent=1 // pred_fallthru
      _
    %v47 = vld [vmem:[#allocation3] sm:$0xf]
    %v48 = vld [vmem:[#allocation6] sm:$0xf]
    %vm49 = vnez %v48
    %v50 = vlaneseq
    %v51 = vshrl.u32 %v50, 7
    %v52 = vlaneseq
    %v53 = vand.u32 %v52, 127
    %v54 = vadd.s32 %v53, 128
    %v55 = vadd.s32 %v53, 256
    %v56 = vadd.s32 %v53, 384
    %v57 = vstv 0
    %v58 = vadd.s32 %v57, %v51
    %v59 = vmul.u32 %v58, 512
    %v60 = vadd.s32 %v59, %v53
    %v61 = vadd.s32 %v59, %v54
    %v62 = vadd.s32 %v59, %v55
    %v63 = vadd.s32 %v59, %v56
    %vm64 = vcmp.lt.s32.totalorder %v60, 16
    %vm65 = vcmp.lt.s32.totalorder %v61, 16
    %vm66 = vcmp.lt.s32.totalorder %v62, 16
    %vm67 = vcmp.lt.s32.totalorder %v63, 16
    %v69 = vlaneseq
    %v70 = vshrl.u32 %v69, 7
    %v71 = vsub.s32 0, %v70
    %v72 = vrot.slane %v47, %v71
    %v73 = vlaneseq
    %v74 = vshrl.u32 %v73, 7
    %v75 = vsub.s32 1, %v74
    %v76 = vrot.slane %v47, %v75
    %v77 = vlaneseq
    %v78 = vshrl.u32 %v77, 7
    %v79 = vsub.s32 2, %v78
    %v80 = vrot.slane %v47, %v79
    %v81 = vlaneseq
    %v82 = vshrl.u32 %v81, 7
    %v83 = vsub.s32 3, %v82
    %v84 = vrot.slane %v47, %v83
    %v89 = vsel %vm64, %v72, 0.0
    %v90 = vsel %vm65, %v76, 0.0
    %v91 = vsel %vm66, %v80, 0.0
    %v92 = vsel %vm67, %v84, 0.0
    %v93 = vmax.f32 %v89, 0.0
    %v94 = vmax.f32 %v90, 0.0
    %v95 = vmax.f32 %v91, 0.0
    %v96 = vmax.f32 %v92, 0.0
    %v97 = vsel %vm49, 16843009, 0
    %v98 = vunpack.c.0.s8 %v97
    %v99 = vunpack.c.1.s8 %v97
    %vm100 = vcmp.ne.s32.totalorder %v98, 0
    %vm101 = vcmp.ne.s32.totalorder %v99, 0
    %v102 = vsel %vm100, 1, 0
    %v103 = vsel %vm101, 1, 0
    %v104 = vlaneseq
    %v105 = vshrl.u32 %v104, 7
    %v106 = vsub.s32 0, %v105
    %v107 = vrot.slane %v102, %v106
    %v108 = vlaneseq
    %v109 = vshrl.u32 %v108, 7
    %v110 = vsub.s32 4, %v109
    %v111 = vrot.slane %v102, %v110
    %v112 = vlaneseq
    %v113 = vshrl.u32 %v112, 7
    %v114 = vsub.s32 0, %v113
    %v115 = vrot.slane %v103, %v114
    %v116 = vlaneseq
    %v117 = vshrl.u32 %v116, 7
    %v118 = vsub.s32 4, %v117
    %v119 = vrot.slane %v103, %v118
    %vm120 = vcmp.ne.s32.totalorder %v107, 0
    %vm121 = vcmp.ne.s32.totalorder %v111, 0
    %vm122 = vcmp.ne.s32.totalorder %v115, 0
    %vm123 = vcmp.ne.s32.totalorder %v119, 0
    %v124 = vsel %vm120, %v89, 0.0
    %v125 = vsel %vm121, %v90, 0.0
    %v126 = vsel %vm122, %v91, 0.0
    %v127 = vsel %vm123, %v92, 0.0
    %v128 = vsub.f32 %v93, %v124
    %v129 = vsub.f32 %v94, %v125
    %v130 = vsub.f32 %v95, %v126
    %v131 = vsub.f32 %v96, %v127
    %v132 = vand.u32 2147483647, %v89
    %v133 = vand.u32 2147483647, %v90
    %v134 = vand.u32 2147483647, %v91
    %v135 = vand.u32 2147483647, %v92
    %v136 = vsub.f32 0.0, %v132
    %v137 = vsub.f32 0.0, %v133
    %v138 = vsub.f32 0.0, %v134
    %v139 = vsub.f32 0.0, %v135
    %v140 = vmul.f32 %v136, 1.442695
    %v141 = vpow.pop %v140
    %v142 = vmul.f32 %v137, 1.442695
    %v143 = vpow.pop %v142
    %v144 = vmul.f32 %v138, 1.442695
    %v145 = vpow.pop %v144
    %v146 = vmul.f32 %v139, 1.442695
    %v147 = vpow.pop %v146
    %v148 = vadd.f32 %v141, 1.0
    %v149 = vlog2.pop %v148
    %v150 = vmul.f32 %v149, 0.6931472
    %v151 = vmul.f32 -0.5, %v141
    %v152 = vadd.f32 %v151, 1.0
    %v153 = vmul.f32 %v152, %v141
    %v154 = vand.u32 2147483647, %v141
    %vm155 = vcmp.lt.f32.partialorder %v154, 0.0004427343
    %v156 = vsel %vm155, %v153, %v150
    %v157 = vadd.f32 %v143, 1.0
    %v158 = vlog2.pop %v157
    %v159 = vmul.f32 %v158, 0.6931472
    %v160 = vmul.f32 -0.5, %v143
    %v161 = vadd.f32 %v160, 1.0
    %v162 = vmul.f32 %v161, %v143
    %v163 = vand.u32 2147483647, %v143
    %vm164 = vcmp.lt.f32.partialorder %v163, 0.0004427343
    %v165 = vsel %vm164, %v162, %v159
    %v166 = vadd.f32 %v145, 1.0
    %v167 = vlog2.pop %v166
    %v168 = vmul.f32 %v167, 0.6931472
    %v169 = vmul.f32 -0.5, %v145
    %v170 = vadd.f32 %v169, 1.0
    %v171 = vmul.f32 %v170, %v145
    %v172 = vand.u32 2147483647, %v145
    %vm173 = vcmp.lt.f32.partialorder %v172, 0.0004427343
    %v174 = vsel %vm173, %v171, %v168
    %v175 = vadd.f32 %v147, 1.0
    %v176 = vlog2.pop %v175
    %v177 = vmul.f32 %v176, 0.6931472
    %v178 = vmul.f32 -0.5, %v147
    %v179 = vadd.f32 %v178, 1.0
    %v180 = vmul.f32 %v179, %v147
    %v181 = vand.u32 2147483647, %v147
    %vm182 = vcmp.lt.f32.partialorder %v181, 0.0004427343
    %v183 = vsel %vm182, %v180, %v177
    %v184 = vadd.f32 %v128, %v156
    %v185 = vadd.f32 %v129, %v165
    %v186 = vadd.f32 %v130, %v174
    %v187 = vadd.f32 %v131, %v183
    %v188 = vld [vmem:[#allocation2] sm:$0xf]
    %v189 = vsel %vm64, %v184, 0.0
    %v190 = vsel %vm65, %v185, 0.0
    %v191 = vsel %vm66, %v186, 0.0
    %v192 = vsel %vm67, %v187, 0.0
    %v197 = vcombine.low %v189, %v190
    %v198 = vcombine.low %v191, %v192
    %v200 = vunpack.c.l.s4 1966171168
    %v201 = vunpack.c.0.s8 %v200
    %v202 = vlaneseq
    %v203 = vshrl.u32 %v202, 7
    %v204 = vsub.s32 %v201, %v203
    %v205 = vrot.slane %v197, %v204
    %v207 = vunpack.c.l.s4 1966171168
    %v208 = vunpack.c.0.s8 %v207
    %v209 = vlaneseq
    %v210 = vshrl.u32 %v209, 7
    %v211 = vsub.s32 %v208, %v210
    %v212 = vrot.slane %v198, %v211
    %v213 = vcombine.low %v205, %v212
    %v215 = vunpack.c.l.s4 1966171168
    %v216 = vunpack.c.0.s8 %v215
    %v217 = vlaneseq
    %v218 = vshrl.u32 %v217, 7
    %v219 = vsub.s32 %v216, %v218
    %v220 = vrot.slane %v213, %v219
    %v222 = vadd.f32 %v188, %v220
    %v223 = vlaneseq
    %vm224 = vcmp.ge.s32.totalorder %v223, 0
    %vm225 = vcmp.lt.s32.totalorder %v223, 512
    %vm226 = vmand %vm224, %vm225
    %227 = vst.msk [vmem:[#allocation2] sm:$0xf] %vm226, %v222
    // Predicated region
    $region22: #{tpu_custom_call.1} parent=1 // pred_check
      %p228 = pneg %p38
    $region23: #{tpu_custom_call.1} parent=1 // pred_check_branch
      %230 = sbr.rel (%p228) target = $region25
    $region24: #{tpu_custom_call.1} parent=1 // pred_region
      %v231 = vld [vmem:[#allocation2] sm:$0xf]
      %v233 = vlaneseq
      %v234 = vshrl.u32 %v233, 7
      %v235 = vsub.s32 0, %v234
      %v236 = vrot.slane %v231, %v235
      %v237 = vlaneseq
      %v238 = vshrl.u32 %v237, 7
      %v239 = vsub.s32 1, %v238
      %v240 = vrot.slane %v231, %v239
      %v241 = vlaneseq
      %v242 = vshrl.u32 %v241, 7
      %v243 = vsub.s32 2, %v242
      %v244 = vrot.slane %v231, %v243
      %v245 = vlaneseq
      %v246 = vshrl.u32 %v245, 7
      %v247 = vsub.s32 3, %v246
      %v248 = vrot.slane %v231, %v247
      %vm253 = vcmask 1040384
      %v254 = vsel %vm253, %v236, 0.0
      %v255 = vsel %vm253, %v240, 0.0
      %v256 = vadd.f32 %v254, %v255
      %v257 = vsel %vm253, %v244, 0.0
      %v258 = vadd.f32 %v256, %v257
      %v259 = vsel %vm253, %v248, 0.0
      %v260 = vadd.f32 %v258, %v259
      %261 = vadd.xlane.f32.xlu0 %v260
      %v262 = vpop.xlane.xlu0 %261
      %v263 = vrot.slane %v262, 4
      %v264 = vadd.f32 %v262, %v263
      %v265 = vrot.slane %v264, 2
      %v266 = vadd.f32 %v264, %v265
      %v267 = vrot.slane %v266, 1
      %v268 = vadd.f32 %v266, %v267
      %s269 = vtos %v268
      %v270 = vrcp.pop 16.0
      %s271 = vtos %v270
      %s272 = smul.f32 %s269, %s271
      %s273 = scalar_lea.smem [#allocation8], 0
      %274 = sst [smem:[%s273]] %s272
    $region25: #{tpu_custom_call.1} parent=1 // pred_fallthru
      _
    // Predicated region
    $region26: #{tpu_custom_call.1} parent=1 // pred_check
      _
    $region27: #{tpu_custom_call.1} parent=1 // pred_check_branch
      %276 = sbr.rel (0) target = $region29
    $region28: #{tpu_custom_call.1} parent=1 // pred_region
      %s278 = ssub.s32 16, 16
      %279 = vsyncadd [#allocation5], %s278
      %282 = dma.smem_to_hbm [#allocation8], 16, %s2, [#allocation5]
    $region29: #{tpu_custom_call.1} parent=1 // pred_fallthru
      _
    // Predicated region
    $region30: #{tpu_custom_call.1} parent=1 // pred_check
      _
    $region31: #{tpu_custom_call.1} parent=1 // pred_check_branch
      %284 = sbr.rel (0) target = $region33
    $region32: #{tpu_custom_call.1} parent=1 // pred_region
      %285 = dma.done [#allocation5], 16
    $region33: #{tpu_custom_call.1} parent=1 // pred_fallthru
      _
    %286 = sfence
    %287 = vsyncpa [#allocation4], 1
    %288 = vsyncpa [#allocation7], 1
    %289 = vsyncpa [#allocation5], 1

</llo_original>
